<compile_context>
chip_gen: v7x
topology: tpu7x:2x2x1
jax: 0.10.0
libtpu: 0.0.40
codegen_flags: <defaults>
</compile_context>

<pallas_src>
import jax
import jax.numpy as jnp
from jax.experimental import pallas as pl
from jax.experimental.pallas import tpu as pltpu


def nlnl_kernel(pred_ref, neg_ref, wrow_ref, out_ref):
    # Load in native dtype, upcast in-kernel (halves HBM traffic for bf16 pred).
    pred = pred_ref[...].astype(jnp.float32)      # (TN, C)
    neg = neg_ref[...]                            # (TN, LN) i32 (padded rows hold -1)
    w_row = wrow_ref[...]                         # (TN, 1)  f32 = weight[labels]

    TN, C = pred.shape
    LN = neg.shape[1]

    # Stable softmax pieces: exp over (TN, C) is the only full-width EUP op.
    m = jnp.max(pred, axis=-1, keepdims=True)     # (TN, 1)  XLU lane reduce
    e = jnp.exp(pred - m)                         # (TN, C)  EUP
    z = jnp.sum(e, axis=-1, keepdims=True)        # (TN, 1)  XLU lane reduce
    log_z = jnp.log(z)                            # (TN, 1)  EUP (one per row)

    # (1, C) iota broadcasts against (TN, 1) label columns — no (TN, C) temp.
    class_ids = jax.lax.broadcasted_iota(jnp.int32, (1, C), 1)

    # Gather-first-then-log. Duplicate negative labels are preserved because
    # every column i contributes its own log term (matches the reference gather).
    #   s_i = log(clamp(1 - e_i/z, 1e-5, 1.0)) = log(max(z - e_i, 1e-5*z)) - log(z)
    gathered = jnp.zeros((TN, 1), jnp.float32)
    for i in range(LN):                           # LN is small & static
        hit = class_ids == neg[:, i:i + 1]        # (TN, C) VPU compare (broadcast)
        e_i = jnp.sum(jnp.where(hit, e, 0.0), axis=-1, keepdims=True)   # (TN, 1)
        gathered = gathered + (jnp.log(jnp.maximum(z - e_i, 1e-5 * z)) - log_z)

    # Padded rows: neg == -1 -> e_i == 0 -> each term is log(z) - log(z) == 0,
    # and w_row is 0 there as well, so they contribute exactly 0.
    partial = jnp.sum(-w_row * gathered)

    # Lane-dense store of the per-tile partial (unmasked vst).
    out_ref[...] = jnp.broadcast_to(partial, out_ref.shape).astype(jnp.float32)


def nlnl_loss(pred, labels, labels_neg, weight, *,
              target_block_bytes=2 << 20, vmem_limit_bytes=48 << 20):
    """pred: (N, C) any float dtype, labels: (N,) i32, labels_neg: (N, ln_neg) i32,
    weight: (C,) f32. Returns the NLNL scalar loss."""
    N, C = pred.shape
    LN = labels_neg.shape[1]

    # Wrapper-side gather of weight[labels] (tiny XLA op, removes two kernel
    # inputs and the in-kernel one-hot weight reduce).
    w_row = jnp.asarray(weight, jnp.float32)[labels].reshape(N, 1)
    neg2d = labels_neg.astype(jnp.int32)

    # Byte-targeted tile: pred block ~target_block_bytes (HBM-roofline friendly),
    # multiple of 32 rows (bf16 packs 16 rows / vreg, int8 needs 32), and small
    # enough that 2x double-buffered input + a few (tn, C) f32 temporaries stay
    # well under v7x's 64 MiB VMEM.
    itemsize = jnp.dtype(pred.dtype).itemsize
    tn = max(32, (target_block_bytes // (C * itemsize)) // 32 * 32)
    n_ceil = ((N + 31) // 32) * 32
    tn = min(tn, n_ceil)

    g = -(-N // tn)
    if g > 1 and g % 2 == 1:
        # Prefer an even grid: the "parallel" axis splits across v7x's 2 TCs.
        tn_alt = max(32, (-(-N // (g + 1)) + 31) // 32 * 32)
        if (-(-N // tn_alt)) % 2 == 0:
            tn = tn_alt
            g = -(-N // tn)

    n_pad = g * tn
    if n_pad != N:
        pad = n_pad - N
        pred = jnp.pad(pred, ((0, pad), (0, 0)))
        # Padded rows: neg = -1 (never matches a class id), w_row = 0.
        neg2d = jnp.pad(neg2d, ((0, pad), (0, 0)), constant_values=-1)
        w_row = jnp.pad(w_row, ((0, pad), (0, 0)))

    partials = pl.pallas_call(
        nlnl_kernel,
        out_shape=jax.ShapeDtypeStruct((g, 8, 128), jnp.float32),
        grid=(g,),
        in_specs=[
            pl.BlockSpec((tn, C), lambda i: (i, 0)),    # pred tile (native dtype)
            pl.BlockSpec((tn, LN), lambda i: (i, 0)),   # negative-labels tile
            pl.BlockSpec((tn, 1), lambda i: (i, 0)),    # weight[labels] tile
        ],
        out_specs=pl.BlockSpec((1, 8, 128), lambda i: (i, 0, 0)),
        compiler_params=pltpu.CompilerParams(
            dimension_semantics=("parallel",),
            vmem_limit_bytes=vmem_limit_bytes),
    )(pred, neg2d, w_row)

    # Per-tile partials are replicated across the (8, 128) tile; take one each.
    total_neg = jnp.sum(partials[:, 0, 0])
    # Positive CE term is identically 0 (all labels forced to -100); denominator = 0 + N.
    return total_neg / jnp.float32(N)


def nlnl_loss_ref(pred, labels, labels_neg, weight):
    """Pure-JAX reference mirroring the PyTorch forward."""
    N = pred.shape[0]
    p = jax.nn.softmax(pred.astype(jnp.float32), axis=1)
    s = jnp.log(jnp.clip(1.0 - p, 1e-5, 1.0))
    s = s * weight[labels][:, None]
    gathered = jnp.take_along_axis(s, labels_neg, axis=1)   # (N, ln_neg)
    loss_neg = jnp.sum(-gathered)        # == NLLLoss mean * (N*ln_neg)
    return loss_neg / N


if __name__ == "__main__":
    num_classes = 32
    ln_neg = 2
    batch = 8

    key = jax.random.PRNGKey(0)
    k_pred, k_lab, k_neg = jax.random.split(key, 3)

    pred = jax.random.normal(k_pred, (batch, num_classes), dtype=jnp.float32)
    labels = jax.random.randint(k_lab, (batch,), 0, num_classes, dtype=jnp.int32)

    # labels_neg = (labels + rand in [1, num_classes-1]) % num_classes  (never equals labels)
    offsets = jax.random.randint(k_neg, (batch, ln_neg), 1, num_classes, dtype=jnp.int32)
    labels_neg = (labels[:, None] + offsets) % num_classes

    # Deterministic synthetic per-class weight: weight = 1 / (counts / counts.max()),
    # with synthetic class counts 1..C (stands in for train_loader target statistics).
    counts = jnp.arange(1, num_classes + 1, dtype=jnp.float32)
    weight = 1.0 / (counts / counts.max())

    loss = nlnl_loss(pred, labels, labels_neg, weight)
    jax.block_until_ready(loss)

    loss_ref = nlnl_loss_ref(pred, labels, labels_neg, weight)
    assert jnp.allclose(loss, loss_ref, rtol=1e-5, atol=1e-5), (loss, loss_ref)

    print("KERNEL_OK")
</pallas_src>

<mosaic_0001>
module attributes {stable_mosaic.version = 11 : i64} {
  func.func @nlnl_kernel(%arg0: i32, %arg1: memref<32x32xf32, #tpu.memory_space<vmem>>, %arg2: memref<32x2xi32, #tpu.memory_space<vmem>>, %arg3: memref<32x1xf32, #tpu.memory_space<vmem>>, %arg4: memref<1x8x128xf32, #tpu.memory_space<vmem>>) attributes {dimension_semantics = [#tpu.dimension_semantics<parallel>], iteration_bounds = array<i64: 1>, scalar_prefetch = 0 : i64, scratch_operands = 0 : i64, tpu.core_type = #tpu.core_type<tc>, window_params = [{transform_indices = @transform_0, window_bounds = array<i64: 32, 32>}, {transform_indices = @transform_1, window_bounds = array<i64: 32, 2>}, {transform_indices = @transform_2, window_bounds = array<i64: 32, 1>}, {transform_indices = @transform_3, window_bounds = array<i64: 1, 8, 128>}]} {
    %c0 = arith.constant 0 : index
    %c0_0 = arith.constant 0 : index
    %0 = vector.load %arg1[%c0, %c0_0] : memref<32x32xf32, #tpu.memory_space<vmem>>, vector<32x32xf32>
    %c0_1 = arith.constant 0 : index
    %c0_2 = arith.constant 0 : index
    %1 = vector.load %arg2[%c0_1, %c0_2] : memref<32x2xi32, #tpu.memory_space<vmem>>, vector<32x2xi32>
    %c0_3 = arith.constant 0 : index
    %c0_4 = arith.constant 0 : index
    %2 = vector.load %arg3[%c0_3, %c0_4] : memref<32x1xf32, #tpu.memory_space<vmem>>, vector<32x1xf32>
    %cst = arith.constant dense<0xFF800000> : vector<32xf32>
    %3 = vector.multi_reduction <maximumf>, %0, %cst [1] : vector<32x32xf32> to vector<32xf32>
    %4 = vector.shape_cast %3 : vector<32xf32> to vector<32x1xf32>
    %5 = vector.broadcast %4 : vector<32x1xf32> to vector<32x32xf32>
    %6 = arith.subf %0, %5 : vector<32x32xf32>
    %7 = math.exp %6 : vector<32x32xf32>
    %cst_5 = arith.constant dense<0.000000e+00> : vector<32xf32>
    %8 = vector.multi_reduction <add>, %7, %cst_5 [1] : vector<32x32xf32> to vector<32xf32>
    %9 = vector.shape_cast %8 : vector<32xf32> to vector<32x1xf32>
    %10 = math.log %9 : vector<32x1xf32>
    %11 = tpu.iota {dimensions = array<i32: 1>} : vector<1x32xi32>
    %cst_6 = arith.constant 0.000000e+00 : f32
    %12 = vector.broadcast %cst_6 : f32 to vector<32x1xf32>
    %13 = vector.extract_strided_slice %1 {offsets = [0, 0], sizes = [32, 1], strides = [1, 1]} : vector<32x2xi32> to vector<32x1xi32>
    %14 = vector.broadcast %11 : vector<1x32xi32> to vector<32x32xi32>
    %15 = vector.broadcast %13 : vector<32x1xi32> to vector<32x32xi32>
    %16 = arith.cmpi eq, %14, %15 : vector<32x32xi32>
    %cst_7 = arith.constant 0.000000e+00 : f32
    %17 = vector.broadcast %cst_7 : f32 to vector<32x32xf32>
    %18 = arith.select %16, %7, %17 : vector<32x32xi1>, vector<32x32xf32>
    %cst_8 = arith.constant dense<0.000000e+00> : vector<32xf32>
    %19 = vector.multi_reduction <add>, %18, %cst_8 [1] : vector<32x32xf32> to vector<32xf32>
    %20 = vector.shape_cast %19 : vector<32xf32> to vector<32x1xf32>
    %21 = arith.subf %9, %20 : vector<32x1xf32>
    %cst_9 = arith.constant 9.99999974E-6 : f32
    %22 = vector.broadcast %cst_9 : f32 to vector<32x1xf32>
    %23 = arith.mulf %22, %9 : vector<32x1xf32>
    %24 = arith.maximumf %21, %23 : vector<32x1xf32>
    %25 = math.log %24 : vector<32x1xf32>
    %26 = arith.subf %25, %10 : vector<32x1xf32>
    %27 = arith.addf %12, %26 : vector<32x1xf32>
    %28 = vector.extract_strided_slice %1 {offsets = [0, 1], sizes = [32, 1], strides = [1, 1]} : vector<32x2xi32> to vector<32x1xi32>
    %29 = vector.broadcast %11 : vector<1x32xi32> to vector<32x32xi32>
    %30 = vector.broadcast %28 : vector<32x1xi32> to vector<32x32xi32>
    %31 = arith.cmpi eq, %29, %30 : vector<32x32xi32>
    %cst_10 = arith.constant 0.000000e+00 : f32
    %32 = vector.broadcast %cst_10 : f32 to vector<32x32xf32>
    %33 = arith.select %31, %7, %32 : vector<32x32xi1>, vector<32x32xf32>
    %cst_11 = arith.constant dense<0.000000e+00> : vector<32xf32>
    %34 = vector.multi_reduction <add>, %33, %cst_11 [1] : vector<32x32xf32> to vector<32xf32>
    %35 = vector.shape_cast %34 : vector<32xf32> to vector<32x1xf32>
    %36 = arith.subf %9, %35 : vector<32x1xf32>
    %cst_12 = arith.constant 9.99999974E-6 : f32
    %37 = vector.broadcast %cst_12 : f32 to vector<32x1xf32>
    %38 = arith.mulf %37, %9 : vector<32x1xf32>
    %39 = arith.maximumf %36, %38 : vector<32x1xf32>
    %40 = math.log %39 : vector<32x1xf32>
    %41 = arith.subf %40, %10 : vector<32x1xf32>
    %42 = arith.addf %27, %41 : vector<32x1xf32>
    %cst_13 = arith.constant 0.000000e+00 : f32
    %43 = vector.broadcast %cst_13 : f32 to vector<32x1xf32>
    %44 = arith.subf %43, %2 : vector<32x1xf32>
    %45 = arith.mulf %44, %42 : vector<32x1xf32>
    %46 = vector.shape_cast %45 : vector<32x1xf32> to vector<1x32x1xf32>
    %cst_14 = arith.constant dense<0.000000e+00> : vector<1xf32>
    %47 = vector.multi_reduction <add>, %46, %cst_14 [1, 2] : vector<1x32x1xf32> to vector<1xf32>
    %48 = vector.shape_cast %47 : vector<1xf32> to vector<1x1x1xf32>
    %49 = vector.extract %48[0, 0, 0] : f32 from vector<1x1x1xf32>
    %50 = vector.broadcast %49 : f32 to vector<1x8x128xf32>
    %c0_15 = arith.constant 0 : index
    %c0_16 = arith.constant 0 : index
    %c0_17 = arith.constant 0 : index
    %51 = vector.load %arg4[%c0_15, %c0_16, %c0_17] : memref<1x8x128xf32, #tpu.memory_space<vmem>>, vector<1x8x128xf32>
    tpu.vector_store %arg4[%c0_15, %c0_16, %c0_17], %50 {strides = array<i32>} : memref<1x8x128xf32, #tpu.memory_space<vmem>>, vector<1x8x128xf32>,
    return
  }
  func.func @transform_0(%arg0: i32) -> (i32, i32) {
    %c0_i32 = arith.constant 0 : i32
    %c0_i32_0 = arith.constant 0 : i32
    return %arg0, %c0_i32 : i32, i32
  }
  func.func @transform_1(%arg0: i32) -> (i32, i32) {
    %c0_i32 = arith.constant 0 : i32
    %c0_i32_0 = arith.constant 0 : i32
    return %arg0, %c0_i32 : i32, i32
  }
  func.func @transform_2(%arg0: i32) -> (i32, i32) {
    %c0_i32 = arith.constant 0 : i32
    %c0_i32_0 = arith.constant 0 : i32
    return %arg0, %c0_i32 : i32, i32
  }
  func.func @transform_3(%arg0: i32) -> (i32, i32, i32) {
    %c0_i32 = arith.constant 0 : i32
    %c0_i32_0 = arith.constant 0 : i32
    %c0_i32_1 = arith.constant 0 : i32
    return %arg0, %c0_i32, %c0_i32_0 : i32, i32, i32
  }
}

</mosaic_0001>

<llo_original>
// kernel: tpu_custom_call.1
$region0: #{tpu_custom_call.1}
  #allocation0 [shape = 'u32[]', space=smem, size = 0x4, offset = 0x4, fixed_abs, tag = 'smem constant byte address 0x4 - core index']
  #allocation1 [shape = 'u32[144,128]{1,0:T(1,128)}', space=vmem, size = 0x12000, scoped, tag = 'internal scratch']
  %s0 = inlined_call_operand.vmem [shape: f32[32,32], index: 0, kind: input, shape index: {}]
  %s1 = inlined_call_operand.vmem [shape: s32[32,2], index: 1, kind: input, shape index: {}]
  %s2 = inlined_call_operand.vmem [shape: f32[32,1], index: 2, kind: input, shape index: {}]
  %s3 = inlined_call_operand.hbm [shape: f32[1,8,128], index: 3, kind: output, shape index: {}]
  %s4 = sld [smem:[#allocation0]]
  $region22: #{tpu_custom_call.1} parent=0
    _
  %s6 = ssub.s32 1, %s4
  %s7 = scalar_select 0, %s6, %s4
  $region1: #{tpu_custom_call.1} parent=0
    #allocation2 [shape = 'u8[4096]{0}', space=vmem, size = 0x1000, scoped, tag = 'output window, operand 0, single buffered']
    #allocation3 [shape = 's32[1]{0}', space=sflag, size = 0x4, scoped, tag = 'scoped memory for tpu_custom_call.1']
    %8 = vsyncpa [#allocation3], 0
    // Predicated region
    $region2: #{tpu_custom_call.1} parent=1 // pred_check
      _
    $region3: #{tpu_custom_call.1} parent=1 // pred_check_branch
      %10 = sbr.rel (0) target = $region5
    $region4: #{tpu_custom_call.1} parent=1 // pred_region
      _
    $region5: #{tpu_custom_call.1} parent=1 // pred_fallthru
      _
    // Predicated region
    $region6: #{tpu_custom_call.1} parent=1 // pred_check
      _
    $region7: #{tpu_custom_call.1} parent=1 // pred_check_branch
      %12 = sbr.rel (0) target = $region9
    $region8: #{tpu_custom_call.1} parent=1 // pred_region
      _
    $region9: #{tpu_custom_call.1} parent=1 // pred_fallthru
      _
    // Predicated region
    $region10: #{tpu_custom_call.1} parent=1 // pred_check
      _
    $region11: #{tpu_custom_call.1} parent=1 // pred_check_branch
      %14 = sbr.rel (0) target = $region13
    $region12: #{tpu_custom_call.1} parent=1 // pred_region
      _
    $region13: #{tpu_custom_call.1} parent=1 // pred_fallthru
      _
    %v15 = vld [vmem:[%s0] sm:$0xff]
    %v16 = vld [vmem:[%s0 + $0x8] sm:$0xff]
    %v17 = vld [vmem:[%s0 + $0x10] sm:$0xff]
    %v18 = vld [vmem:[%s0 + $0x18] sm:$0xff]
    %v19 = vld [vmem:[%s1] sm:$0xff]
    %v20 = vld [vmem:[%s1 + $0x8] sm:$0xff]
    %v21 = vld [vmem:[%s1 + $0x10] sm:$0xff]
    %v22 = vld [vmem:[%s1 + $0x18] sm:$0xff]
    %v23 = vld [vmem:[%s2] sm:$0xff]
    %v24 = vld [vmem:[%s2 + $0x8] sm:$0xff]
    %v25 = vld [vmem:[%s2 + $0x10] sm:$0xff]
    %v26 = vld [vmem:[%s2 + $0x18] sm:$0xff]
    %vm27 = vcmask 261120
    %v28 = vsel %vm27, %v15, -inf
    %29 = vmax.xlane.f32.xlu0 %v28
    %v30 = vpop.xlane.xlu0 %29
    %v31 = vsel %vm27, %v16, -inf
    %32 = vmax.xlane.f32.xlu0 %v31
    %v33 = vpop.xlane.xlu0 %32
    %v34 = vsel %vm27, %v17, -inf
    %35 = vmax.xlane.f32.xlu0 %v34
    %v36 = vpop.xlane.xlu0 %35
    %v37 = vsel %vm27, %v18, -inf
    %38 = vmax.xlane.f32.xlu0 %v37
    %v39 = vpop.xlane.xlu0 %38
    %v40 = vsub.f32 %v15, %v30
    %v41 = vsub.f32 %v16, %v33
    %v42 = vsub.f32 %v17, %v36
    %v43 = vsub.f32 %v18, %v39
    %v44 = vmul.f32 %v40, 1.442695
    %v45 = vpow.pop %v44
    %v46 = vmul.f32 %v41, 1.442695
    %v47 = vpow.pop %v46
    %v48 = vmul.f32 %v42, 1.442695
    %v49 = vpow.pop %v48
    %v50 = vmul.f32 %v43, 1.442695
    %v51 = vpow.pop %v50
    %v52 = vsel %vm27, %v45, 0.0
    %53 = vadd.xlane.f32.xlu0 %v52
    %v54 = vpop.xlane.xlu0 %53
    %v55 = vsel %vm27, %v47, 0.0
    %56 = vadd.xlane.f32.xlu0 %v55
    %v57 = vpop.xlane.xlu0 %56
    %v58 = vsel %vm27, %v49, 0.0
    %59 = vadd.xlane.f32.xlu0 %v58
    %v60 = vpop.xlane.xlu0 %59
    %v61 = vsel %vm27, %v51, 0.0
    %62 = vadd.xlane.f32.xlu0 %v61
    %v63 = vpop.xlane.xlu0 %62
    %v64 = vlog2.pop %v54
    %v65 = vmul.f32 %v64, 0.6931472
    %v66 = vlog2.pop %v57
    %v67 = vmul.f32 %v66, 0.6931472
    %v68 = vlog2.pop %v60
    %v69 = vmul.f32 %v68, 0.6931472
    %v70 = vlog2.pop %v63
    %v71 = vmul.f32 %v70, 0.6931472
    %v72 = vlaneseq
    %v73 = vand.u32 %v72, 127
    %74 = vset.pattern.permute.xlu0 0
    %75 = vperm.xlu0 %74, %v19
    %v76 = vpop.permute.xlu0 %75
    %77 = vset.pattern.permute.xlu0 0
    %78 = vperm.xlu0 %77, %v20
    %v79 = vpop.permute.xlu0 %78
    %80 = vset.pattern.permute.xlu0 0
    %81 = vperm.xlu0 %80, %v21
    %v82 = vpop.permute.xlu0 %81
    %83 = vset.pattern.permute.xlu0 0
    %84 = vperm.xlu0 %83, %v22
    %v85 = vpop.permute.xlu0 %84
    %vm86 = vcmp.eq.s32.totalorder %v73, %v76
    %vm87 = vcmp.eq.s32.totalorder %v73, %v79
    %vm88 = vcmp.eq.s32.totalorder %v73, %v82
    %vm89 = vcmp.eq.s32.totalorder %v73, %v85
    %v90 = vsel %vm86, %v45, 0.0
    %v91 = vsel %vm87, %v47, 0.0
    %v92 = vsel %vm88, %v49, 0.0
    %v93 = vsel %vm89, %v51, 0.0
    %v94 = vsel %vm27, %v90, 0.0
    %95 = vadd.xlane.f32.xlu0 %v94
    %v96 = vpop.xlane.xlu0 %95
    %v97 = vsel %vm27, %v91, 0.0
    %98 = vadd.xlane.f32.xlu0 %v97
    %v99 = vpop.xlane.xlu0 %98
    %v100 = vsel %vm27, %v92, 0.0
    %101 = vadd.xlane.f32.xlu0 %v100
    %v102 = vpop.xlane.xlu0 %101
    %v103 = vsel %vm27, %v93, 0.0
    %104 = vadd.xlane.f32.xlu0 %v103
    %v105 = vpop.xlane.xlu0 %104
    %v106 = vsub.f32 %v54, %v96
    %v107 = vsub.f32 %v57, %v99
    %v108 = vsub.f32 %v60, %v102
    %v109 = vsub.f32 %v63, %v105
    %v110 = vmul.f32 %v54, 1e-05
    %v111 = vmul.f32 %v57, 1e-05
    %v112 = vmul.f32 %v60, 1e-05
    %v113 = vmul.f32 %v63, 1e-05
    %v114 = vmax.f32 %v106, %v110
    %v115 = vmax.f32 %v107, %v111
    %v116 = vmax.f32 %v108, %v112
    %v117 = vmax.f32 %v109, %v113
    %v118 = vlog2.pop %v114
    %v119 = vmul.f32 %v118, 0.6931472
    %v120 = vlog2.pop %v115
    %v121 = vmul.f32 %v120, 0.6931472
    %v122 = vlog2.pop %v116
    %v123 = vmul.f32 %v122, 0.6931472
    %v124 = vlog2.pop %v117
    %v125 = vmul.f32 %v124, 0.6931472
    %v126 = vsub.f32 %v119, %v65
    %v127 = vsub.f32 %v121, %v67
    %v128 = vsub.f32 %v123, %v69
    %v129 = vsub.f32 %v125, %v71
    %v130 = vadd.f32 %v126, 0.0
    %v131 = vadd.f32 %v127, 0.0
    %v132 = vadd.f32 %v128, 0.0
    %v133 = vadd.f32 %v129, 0.0
    %134 = vset.pattern.permute.xlu0 1
    %135 = vperm.xlu0 %134, %v19
    %v136 = vpop.permute.xlu0 %135
    %137 = vset.pattern.permute.xlu0 1
    %138 = vperm.xlu0 %137, %v20
    %v139 = vpop.permute.xlu0 %138
    %140 = vset.pattern.permute.xlu0 1
    %141 = vperm.xlu0 %140, %v21
    %v142 = vpop.permute.xlu0 %141
    %143 = vset.pattern.permute.xlu0 1
    %144 = vperm.xlu0 %143, %v22
    %v145 = vpop.permute.xlu0 %144
    %vm146 = vcmp.eq.s32.totalorder %v73, %v136
    %vm147 = vcmp.eq.s32.totalorder %v73, %v139
    %vm148 = vcmp.eq.s32.totalorder %v73, %v142
    %vm149 = vcmp.eq.s32.totalorder %v73, %v145
    %v150 = vsel %vm146, %v45, 0.0
    %v151 = vsel %vm147, %v47, 0.0
    %v152 = vsel %vm148, %v49, 0.0
    %v153 = vsel %vm149, %v51, 0.0
    %v154 = vsel %vm27, %v150, 0.0
    %155 = vadd.xlane.f32.xlu0 %v154
    %v156 = vpop.xlane.xlu0 %155
    %v157 = vsel %vm27, %v151, 0.0
    %158 = vadd.xlane.f32.xlu0 %v157
    %v159 = vpop.xlane.xlu0 %158
    %v160 = vsel %vm27, %v152, 0.0
    %161 = vadd.xlane.f32.xlu0 %v160
    %v162 = vpop.xlane.xlu0 %161
    %v163 = vsel %vm27, %v153, 0.0
    %164 = vadd.xlane.f32.xlu0 %v163
    %v165 = vpop.xlane.xlu0 %164
    %v166 = vsub.f32 %v54, %v156
    %v167 = vsub.f32 %v57, %v159
    %v168 = vsub.f32 %v60, %v162
    %v169 = vsub.f32 %v63, %v165
    %v170 = vmax.f32 %v166, %v110
    %v171 = vmax.f32 %v167, %v111
    %v172 = vmax.f32 %v168, %v112
    %v173 = vmax.f32 %v169, %v113
    %v174 = vlog2.pop %v170
    %v175 = vmul.f32 %v174, 0.6931472
    %v176 = vlog2.pop %v171
    %v177 = vmul.f32 %v176, 0.6931472
    %v178 = vlog2.pop %v172
    %v179 = vmul.f32 %v178, 0.6931472
    %v180 = vlog2.pop %v173
    %v181 = vmul.f32 %v180, 0.6931472
    %v182 = vsub.f32 %v175, %v65
    %v183 = vsub.f32 %v177, %v67
    %v184 = vsub.f32 %v179, %v69
    %v185 = vsub.f32 %v181, %v71
    %v186 = vadd.f32 %v130, %v182
    %v187 = vadd.f32 %v131, %v183
    %v188 = vadd.f32 %v132, %v184
    %v189 = vadd.f32 %v133, %v185
    %v190 = vsub.f32 0.0, %v23
    %v191 = vsub.f32 0.0, %v24
    %v192 = vsub.f32 0.0, %v25
    %v193 = vsub.f32 0.0, %v26
    %v194 = vmul.f32 %v190, %v186
    %v195 = vmul.f32 %v191, %v187
    %v196 = vmul.f32 %v192, %v188
    %v197 = vmul.f32 %v193, %v189
    %vm198 = vcmask 7168
    %v199 = vsel %vm198, %v194, 0.0
    %v200 = vsel %vm198, %v195, 0.0
    %v201 = vadd.f32 %v199, %v200
    %v202 = vsel %vm198, %v196, 0.0
    %v203 = vadd.f32 %v201, %v202
    %v204 = vsel %vm198, %v197, 0.0
    %v205 = vadd.f32 %v203, %v204
    %206 = vadd.xlane.f32.xlu0 %v205
    %v207 = vpop.xlane.xlu0 %206
    %v208 = vrot.slane %v207, 4
    %v209 = vadd.f32 %v207, %v208
    %v210 = vrot.slane %v209, 2
    %v211 = vadd.f32 %v209, %v210
    %v212 = vrot.slane %v211, 1
    %v213 = vadd.f32 %v211, %v212
    %s214 = vtos %v213
    %v215 = vstv %s214
    %216 = vst [vmem:[#allocation2] sm:$0xff] %v215
    // Predicated region
    $region14: #{tpu_custom_call.1} parent=1 // pred_check
      _
    $region15: #{tpu_custom_call.1} parent=1 // pred_check_branch
      %218 = sbr.rel (0) target = $region17
    $region16: #{tpu_custom_call.1} parent=1 // pred_region
      %s220 = ssub.s32 128, 128
      %221 = vsyncadd [#allocation3], %s220
      %s223 = sshll.u32 [#allocation2], 4
      %s224 = int_to_ptr.vmem [resolvable:$true] %s223
      %226 = dma.vmem_to_hbm [thread:$0]  %s224, 128, %s3, [#allocation3]
    $region17: #{tpu_custom_call.1} parent=1 // pred_fallthru
      _
    // Predicated region
    $region18: #{tpu_custom_call.1} parent=1 // pred_check
      _
    $region19: #{tpu_custom_call.1} parent=1 // pred_check_branch
      %228 = sbr.rel (0) target = $region21
    $region20: #{tpu_custom_call.1} parent=1 // pred_region
      %229 = dma.done [#allocation3], 128
    $region21: #{tpu_custom_call.1} parent=1 // pred_fallthru
      _
    %230 = vsyncpa [#allocation3], 1

</llo_original>
